<compile_context>
chip_gen: v5e
topology: v5e:2x2
jax: 0.10.0
libtpu: 0.0.40
codegen_flags: <defaults>
</compile_context>

<pallas_src>
import math
import functools

import jax
import jax.numpy as jnp
from jax.experimental import pallas as pl
from jax.experimental.pallas import tpu as pltpu


# ----------------------------------------------------------------------------
# Helpers
# ----------------------------------------------------------------------------
@functools.lru_cache(maxsize=1)
def _vmem_limit():
    # v5e/v6e: 128 MiB physical -> ~64 MiB scoped; v7x: 64 MiB -> keep 32 MiB.
    try:
        cap = pltpu.get_tpu_info().vmem_capacity_bytes
        return int(max(min(cap // 2, 100 * 1024 * 1024), 32 * 1024 * 1024))
    except Exception:
        return 32 * 1024 * 1024


def _w3x3_to_taps(w_oihw):
    """(Cout, Cin, 3, 3) -> (9, Cin, Cout); tap order t = dy*3 + dx."""
    cout, cin = w_oihw.shape[:2]
    return jnp.transpose(w_oihw, (2, 3, 1, 0)).reshape(9, cin, cout)


def _conv3x3_acc(x_ref, w_ref, H, W):
    """In-kernel im2col: 9 shifted-slice matmuls on a padded (H+2, W+2, C) tile.

    Returns the f32 accumulator of shape (H*W, Cout)."""
    x = x_ref[...]                                   # (H+2, W+2, C) compute dtype
    cin = x.shape[-1]
    acc = None
    t = 0
    for dy in range(3):
        for dx in range(3):
            tap = x[dy:dy + H, dx:dx + W, :].reshape(H * W, cin)
            prod = jnp.dot(tap, w_ref[t], preferred_element_type=jnp.float32)
            acc = prod if acc is None else acc + prod
            t += 1
    return acc                                       # (H*W, Cout) f32


# ----------------------------------------------------------------------------
# Fused q/k/v 3x3 conv (one sample per grid step, weight resident in VMEM)
# ----------------------------------------------------------------------------
def _qkv_conv_kernel(x_ref, w_ref, q_ref, k_ref, v_ref, *, H, W):
    c = q_ref.shape[-1]
    acc = _conv3x3_acc(x_ref, w_ref, H, W)           # (HW, 3C) f32
    # TODO(synk): pad C to a multiple of 128 for lane-dense stores when C is
    # small / unaligned (demo C=32); irrelevant at production C=512.
    q_ref[...] = acc[:, 0:c].astype(q_ref.dtype)
    k_ref[...] = acc[:, c:2 * c].astype(k_ref.dtype)
    v_ref[...] = acc[:, 2 * c:3 * c].astype(v_ref.dtype)


def _qkv_conv(x_pad, w_taps, *, H, W, out_dtype):
    N = x_pad.shape[0]
    C = x_pad.shape[-1]
    HW = H * W
    kernel = functools.partial(_qkv_conv_kernel, H=H, W=W)
    out_sds = jax.ShapeDtypeStruct((N, HW, C), out_dtype)
    out_spec = pl.BlockSpec((None, HW, C), lambda i: (i, 0, 0))
    # TODO(synk): at production sizes (C=512) add a Cout grid axis with an f32
    # VMEM accumulator + pl.when finalize, and pipeline_mode=pl.Buffered(1) on
    # the constant-index weight input, to bound VMEM on v7x (64 MiB).
    return pl.pallas_call(
        kernel,
        out_shape=(out_sds, out_sds, out_sds),
        grid=(N,),
        in_specs=[
            pl.BlockSpec((None, H + 2, W + 2, C), lambda i: (i, 0, 0, 0)),
            pl.BlockSpec((9, C, 3 * C), lambda i: (0, 0, 0)),   # resident weight
        ],
        out_specs=(out_spec, out_spec, out_spec),
        compiler_params=pltpu.CompilerParams(
            dimension_semantics=("parallel",),
            vmem_limit_bytes=_vmem_limit()),
    )(x_pad, w_taps)


# ----------------------------------------------------------------------------
# Final 3x3 conv fused with the residual add
# ----------------------------------------------------------------------------
def _res_conv_kernel(x_ref, w_ref, r_ref, o_ref, *, H, W):
    acc = _conv3x3_acc(x_ref, w_ref, H, W)           # (HW, C) f32
    o_ref[...] = (acc + r_ref[...].astype(jnp.float32)).astype(o_ref.dtype)


def _residual_conv(x_pad, w_taps, residual_rows, *, H, W):
    N = x_pad.shape[0]
    C = x_pad.shape[-1]
    HW = H * W
    kernel = functools.partial(_res_conv_kernel, H=H, W=W)
    return pl.pallas_call(
        kernel,
        out_shape=jax.ShapeDtypeStruct((N, HW, C), jnp.float32),
        grid=(N,),
        in_specs=[
            pl.BlockSpec((None, H + 2, W + 2, C), lambda i: (i, 0, 0, 0)),
            pl.BlockSpec((9, C, C), lambda i: (0, 0, 0)),       # resident weight
            pl.BlockSpec((None, HW, C), lambda i: (i, 0, 0)),   # residual (f32)
        ],
        out_specs=pl.BlockSpec((None, HW, C), lambda i: (i, 0, 0)),
        compiler_params=pltpu.CompilerParams(
            dimension_semantics=("parallel",),
            vmem_limit_bytes=_vmem_limit()),
    )(x_pad, w_taps, residual_rows)


# ----------------------------------------------------------------------------
# Cross-sample attention + GroupNorm(1, C) + LeakyReLU(0.3)
# One grid step per query sample; k/v stay resident (constant index_map).
# ----------------------------------------------------------------------------
def _attn_gn_lrelu_kernel(q_ref, k_ref, v_ref, g_ref, b_ref, o_ref, *, eps, slope):
    n = k_ref.shape[0]
    q = q_ref[...].astype(jnp.float32)               # (HW, C); scale folded into conv_q
    hw, c = q.shape

    m0 = jnp.full((hw, 1), -jnp.inf, jnp.float32)
    l0 = jnp.zeros((hw, 1), jnp.float32)
    a0 = jnp.zeros((hw, c), jnp.float32)

    def body(j, carry):                              # online softmax over key samples
        m, l, acc = carry
        k_j = k_ref[j].astype(jnp.float32)           # (HW, C) — only k/v rows loaded
        v_j = v_ref[j].astype(jnp.float32)
        s = jnp.sum(q * k_j, axis=-1, keepdims=True)  # (HW, 1) logits
        m_new = jnp.maximum(m, s)
        alpha = jnp.exp(m - m_new)
        p = jnp.exp(s - m_new)
        return m_new, alpha * l + p, alpha * acc + p * v_j

    _, l, acc = jax.lax.fori_loop(0, n, body, (m0, l0, a0), unroll=2)

    # Exact divide (pl.reciprocal(approx=True) previously cost 2.8e-3 end-to-end).
    virt = acc / l                                    # (HW, C)

    # GroupNorm(1, C): per-sample stats over all (HW, C), per-channel affine.
    mean = jnp.mean(virt)
    var = jnp.mean((virt - mean) ** 2)                # biased, as in torch
    virt = (virt - mean) * jax.lax.rsqrt(var + eps)
    virt = virt * g_ref[...] + b_ref[...]             # (1, C) broadcasts
    # LeakyReLU(0.3)
    o_ref[...] = jnp.where(virt >= 0.0, virt, slope * virt).astype(o_ref.dtype)


def _attention_groupnorm(q, k, v, gamma, beta, *, out_dtype, eps=1e-5, slope=0.3):
    N, HW, C = q.shape
    g = gamma.reshape(1, C).astype(jnp.float32)
    b = beta.reshape(1, C).astype(jnp.float32)
    kernel = functools.partial(_attn_gn_lrelu_kernel, eps=eps, slope=slope)
    # TODO(synk): for very large N*HW*C, give the resident k/v inputs
    # pipeline_mode=pl.Buffered(1) (single-buffered) and tile HW to bound VMEM.
    return pl.pallas_call(
        kernel,
        out_shape=jax.ShapeDtypeStruct((N, HW, C), out_dtype),
        grid=(N,),
        in_specs=[
            pl.BlockSpec((None, HW, C), lambda i: (i, 0, 0)),   # q of sample i only
            pl.BlockSpec((N, HW, C), lambda i: (0, 0, 0)),      # all k, resident
            pl.BlockSpec((N, HW, C), lambda i: (0, 0, 0)),      # all v, resident
            pl.BlockSpec((1, C), lambda i: (0, 0)),             # gamma
            pl.BlockSpec((1, C), lambda i: (0, 0)),             # beta
        ],
        out_specs=pl.BlockSpec((None, HW, C), lambda i: (i, 0, 0)),
        compiler_params=pltpu.CompilerParams(
            dimension_semantics=("parallel",),                  # v7x: 2 TCs
            vmem_limit_bytes=_vmem_limit()),
    )(q, k, v, g, b)


# ----------------------------------------------------------------------------
# Full HR2O_NL forward (the block ACARHead stacks in self.hr2o)
# ----------------------------------------------------------------------------
def hr2o_nl_forward(x_nchw, params, hidden_dim, *, compute_dtype=jnp.bfloat16):
    # x: (N, C, H, W) float32, NCHW like PyTorch.
    N, C, H, W = x_nchw.shape
    HW = H * W
    halo = ((0, 0), (1, 1), (1, 1), (0, 0))

    # single layout change in: NCHW -> channels-last
    x_lc = jnp.transpose(x_nchw, (0, 2, 3, 1))               # (N, H, W, C) f32
    x_rows = x_lc.reshape(N, HW, C)                          # residual, kept f32

    # fused q/k/v weights as 9 taps; 1/sqrt(hidden_dim) folded into conv_q.
    scale = 1.0 / math.sqrt(hidden_dim)
    w_qkv = jnp.concatenate(
        [_w3x3_to_taps(params['wq']) * scale,
         _w3x3_to_taps(params['wk']),
         _w3x3_to_taps(params['wv'])], axis=-1).astype(compute_dtype)   # (9, C, 3C)
    w_out = _w3x3_to_taps(params['wc']).astype(compute_dtype)           # (9, C, C)

    x_pad = jnp.pad(x_lc, halo).astype(compute_dtype)        # (N, H+2, W+2, C)
    q, k, v = _qkv_conv(x_pad, w_qkv, H=H, W=W, out_dtype=compute_dtype)

    virt = _attention_groupnorm(q, k, v, params['gamma'], params['beta'],
                                out_dtype=compute_dtype)     # (N, HW, C)

    # TODO(synk): nn.Dropout(0.2) is a no-op in eval mode; no RNG mask applied.
    virt_pad = jnp.pad(virt.reshape(N, H, W, C), halo)       # compute_dtype
    out_rows = _residual_conv(virt_pad, w_out, x_rows, H=H, W=W)   # (N, HW, C) f32

    # single layout change out
    return jnp.transpose(out_rows.reshape(N, H, W, C), (0, 3, 1, 2))


# ----------------------------------------------------------------------------
# Pure-JAX reference (HIGHEST precision so the reference itself is accurate)
# ----------------------------------------------------------------------------
def ref_forward(x, params, hidden_dim):
    def conv(z, w):
        return jax.lax.conv_general_dilated(
            z, w, (1, 1), 'SAME', dimension_numbers=('NCHW', 'OIHW', 'NCHW'),
            precision=jax.lax.Precision.HIGHEST)
    q = conv(x, params['wq'])
    k = conv(x, params['wk'])
    v = conv(x, params['wv'])
    att = jnp.sum(q[:, None] * k[None], axis=2) / math.sqrt(hidden_dim)
    att = jax.nn.softmax(att, axis=1)
    virt = jnp.sum(att[:, :, None] * v[None], axis=1)
    mean = virt.mean(axis=(1, 2, 3), keepdims=True)
    var = virt.var(axis=(1, 2, 3), keepdims=True)
    virt = (virt - mean) / jnp.sqrt(var + 1e-5)
    virt = virt * params['gamma'][None, :, None, None] + params['beta'][None, :, None, None]
    virt = jnp.where(virt >= 0, virt, 0.3 * virt)
    return x + conv(virt, params['wc'])


if __name__ == "__main__":
    key = jax.random.PRNGKey(0)
    N, C, H, W = 2, 32, 8, 8          # batch=2, hidden_dim=32, spatial 8x8
    hidden_dim = C
    depth = 2                         # ACARHead default: two stacked HR2O_NL blocks

    keys = jax.random.split(key, 1 + 6 * depth)
    x = jax.random.normal(keys[0], (N, C, H, W), jnp.float32)

    bound = 1.0 / math.sqrt(C * 3 * 3)
    params_list = []
    for d in range(depth):
        ks = keys[1 + 6 * d: 1 + 6 * (d + 1)]
        params_list.append(dict(
            wq=jax.random.uniform(ks[0], (C, C, 3, 3), jnp.float32, -bound, bound),
            wk=jax.random.uniform(ks[1], (C, C, 3, 3), jnp.float32, -bound, bound),
            wv=jax.random.uniform(ks[2], (C, C, 3, 3), jnp.float32, -bound, bound),
            wc=jax.random.uniform(ks[3], (C, C, 3, 3), jnp.float32, -bound, bound),
            gamma=jax.random.uniform(ks[4], (C,), jnp.float32, 0.5, 1.5),
            beta=jax.random.uniform(ks[5], (C,), jnp.float32, -0.5, 0.5)))

    def run_stack(xx, dtype):
        for p in params_list:
            xx = hr2o_nl_forward(xx, p, hidden_dim, compute_dtype=dtype)
        return xx

    ref = x
    for p in params_list:
        ref = ref_forward(ref, p, hidden_dim)
    ref = jax.block_until_ready(ref)
    ref_scale = float(jnp.max(jnp.abs(ref)))

    # 1) f32 validation path (f32 MXU operands, exact softmax divide).
    #    Tolerance leaves headroom for backend-dependent dot/conv precision.
    out32 = jax.block_until_ready(run_stack(x, jnp.float32))
    err32 = float(jnp.max(jnp.abs(out32 - ref)))
    assert out32.shape == (N, C, H, W), out32.shape
    assert err32 < 1e-3 + 2e-2 * ref_scale, f"f32 path max_err={err32} (ref_scale={ref_scale})"

    # 2) default perf path: bf16 MXU operands / intermediates, f32 accumulation.
    out16 = jax.block_until_ready(run_stack(x, jnp.bfloat16))
    err16 = float(jnp.max(jnp.abs(out16 - ref)))
    assert out16.shape == (N, C, H, W), out16.shape
    assert err16 < 1e-3 + 4e-2 * ref_scale, f"bf16 path max_err={err16} (ref_scale={ref_scale})"

    print("KERNEL_OK")
</pallas_src>

<mosaic_0001>
module attributes {stable_mosaic.version = 11 : i64} {
  func.func @_qkv_conv_kernel(%arg0: i32, %arg1: memref<1x10x10x32xf32, #tpu.memory_space<vmem>>, %arg2: memref<9x32x96xf32, #tpu.memory_space<vmem>>, %arg3: memref<1x64x32xf32, #tpu.memory_space<vmem>>, %arg4: memref<1x64x32xf32, #tpu.memory_space<vmem>>, %arg5: memref<1x64x32xf32, #tpu.memory_space<vmem>>) attributes {dimension_semantics = [#tpu.dimension_semantics<parallel>], iteration_bounds = array<i64: 2>, scalar_prefetch = 0 : i64, scratch_operands = 0 : i64, tpu.core_type = #tpu.core_type<tc>, window_params = [{transform_indices = @transform_0, window_bounds = array<i64: 1, 10, 10, 32>}, {pipeline_mode = #tpu.pipeline_mode<synchronous>, transform_indices = @transform_1, window_bounds = array<i64: 9, 32, 96>}, {transform_indices = @transform_2, window_bounds = array<i64: 1, 64, 32>}, {transform_indices = @transform_3, window_bounds = array<i64: 1, 64, 32>}, {transform_indices = @transform_4, window_bounds = array<i64: 1, 64, 32>}]} {
    %c0 = arith.constant 0 : index
    %c0_0 = arith.constant 0 : index
    %c0_1 = arith.constant 0 : index
    %c0_2 = arith.constant 0 : index
    %0 = vector.load %arg1[%c0, %c0_0, %c0_1, %c0_2] : memref<1x10x10x32xf32, #tpu.memory_space<vmem>>, vector<1x10x10x32xf32>
    %1 = vector.shape_cast %0 : vector<1x10x10x32xf32> to vector<10x10x32xf32>
    %2 = vector.extract_strided_slice %1 {offsets = [0, 0, 0], sizes = [8, 8, 32], strides = [1, 1, 1]} : vector<10x10x32xf32> to vector<8x8x32xf32>
    %3 = vector.shape_cast %2 : vector<8x8x32xf32> to vector<64x32xf32>
    %c0_3 = arith.constant 0 : index
    %c0_4 = arith.constant 0 : index
    %c0_5 = arith.constant 0 : index
    %4 = vector.load %arg2[%c0_3, %c0_4, %c0_5] : memref<9x32x96xf32, #tpu.memory_space<vmem>>, vector<1x32x96xf32>
    %5 = vector.shape_cast %4 : vector<1x32x96xf32> to vector<32x96xf32>
    %cst = arith.constant dense<0.000000e+00> : vector<64x96xf32>
    %6 = tpu.matmul %3, %5, %cst {dimension_numbers = #tpu.dot_dimension_numbers<[1], [0], [0], [1], [0, 0, 1, 1], [], []>} : vector<64x32xf32>, vector<32x96xf32>, vector<64x96xf32> -> vector<64x96xf32>
    %7 = vector.extract_strided_slice %1 {offsets = [0, 1, 0], sizes = [8, 8, 32], strides = [1, 1, 1]} : vector<10x10x32xf32> to vector<8x8x32xf32>
    %8 = vector.shape_cast %7 : vector<8x8x32xf32> to vector<64x32xf32>
    %c1 = arith.constant 1 : index
    %c0_6 = arith.constant 0 : index
    %c0_7 = arith.constant 0 : index
    %9 = vector.load %arg2[%c1, %c0_6, %c0_7] : memref<9x32x96xf32, #tpu.memory_space<vmem>>, vector<1x32x96xf32>
    %10 = vector.shape_cast %9 : vector<1x32x96xf32> to vector<32x96xf32>
    %cst_8 = arith.constant dense<0.000000e+00> : vector<64x96xf32>
    %11 = tpu.matmul %8, %10, %cst_8 {dimension_numbers = #tpu.dot_dimension_numbers<[1], [0], [0], [1], [0, 0, 1, 1], [], []>} : vector<64x32xf32>, vector<32x96xf32>, vector<64x96xf32> -> vector<64x96xf32>
    %12 = arith.addf %6, %11 : vector<64x96xf32>
    %13 = vector.extract_strided_slice %1 {offsets = [0, 2, 0], sizes = [8, 8, 32], strides = [1, 1, 1]} : vector<10x10x32xf32> to vector<8x8x32xf32>
    %14 = vector.shape_cast %13 : vector<8x8x32xf32> to vector<64x32xf32>
    %c2 = arith.constant 2 : index
    %c0_9 = arith.constant 0 : index
    %c0_10 = arith.constant 0 : index
    %15 = vector.load %arg2[%c2, %c0_9, %c0_10] : memref<9x32x96xf32, #tpu.memory_space<vmem>>, vector<1x32x96xf32>
    %16 = vector.shape_cast %15 : vector<1x32x96xf32> to vector<32x96xf32>
    %cst_11 = arith.constant dense<0.000000e+00> : vector<64x96xf32>
    %17 = tpu.matmul %14, %16, %cst_11 {dimension_numbers = #tpu.dot_dimension_numbers<[1], [0], [0], [1], [0, 0, 1, 1], [], []>} : vector<64x32xf32>, vector<32x96xf32>, vector<64x96xf32> -> vector<64x96xf32>
    %18 = arith.addf %12, %17 : vector<64x96xf32>
    %19 = vector.extract_strided_slice %1 {offsets = [1, 0, 0], sizes = [8, 8, 32], strides = [1, 1, 1]} : vector<10x10x32xf32> to vector<8x8x32xf32>
    %20 = vector.shape_cast %19 : vector<8x8x32xf32> to vector<64x32xf32>
    %c3 = arith.constant 3 : index
    %c0_12 = arith.constant 0 : index
    %c0_13 = arith.constant 0 : index
    %21 = vector.load %arg2[%c3, %c0_12, %c0_13] : memref<9x32x96xf32, #tpu.memory_space<vmem>>, vector<1x32x96xf32>
    %22 = vector.shape_cast %21 : vector<1x32x96xf32> to vector<32x96xf32>
    %cst_14 = arith.constant dense<0.000000e+00> : vector<64x96xf32>
    %23 = tpu.matmul %20, %22, %cst_14 {dimension_numbers = #tpu.dot_dimension_numbers<[1], [0], [0], [1], [0, 0, 1, 1], [], []>} : vector<64x32xf32>, vector<32x96xf32>, vector<64x96xf32> -> vector<64x96xf32>
    %24 = arith.addf %18, %23 : vector<64x96xf32>
    %25 = vector.extract_strided_slice %1 {offsets = [1, 1, 0], sizes = [8, 8, 32], strides = [1, 1, 1]} : vector<10x10x32xf32> to vector<8x8x32xf32>
    %26 = vector.shape_cast %25 : vector<8x8x32xf32> to vector<64x32xf32>
    %c4 = arith.constant 4 : index
    %c0_15 = arith.constant 0 : index
    %c0_16 = arith.constant 0 : index
    %27 = vector.load %arg2[%c4, %c0_15, %c0_16] : memref<9x32x96xf32, #tpu.memory_space<vmem>>, vector<1x32x96xf32>
    %28 = vector.shape_cast %27 : vector<1x32x96xf32> to vector<32x96xf32>
    %cst_17 = arith.constant dense<0.000000e+00> : vector<64x96xf32>
    %29 = tpu.matmul %26, %28, %cst_17 {dimension_numbers = #tpu.dot_dimension_numbers<[1], [0], [0], [1], [0, 0, 1, 1], [], []>} : vector<64x32xf32>, vector<32x96xf32>, vector<64x96xf32> -> vector<64x96xf32>
    %30 = arith.addf %24, %29 : vector<64x96xf32>
    %31 = vector.extract_strided_slice %1 {offsets = [1, 2, 0], sizes = [8, 8, 32], strides = [1, 1, 1]} : vector<10x10x32xf32> to vector<8x8x32xf32>
    %32 = vector.shape_cast %31 : vector<8x8x32xf32> to vector<64x32xf32>
    %c5 = arith.constant 5 : index
    %c0_18 = arith.constant 0 : index
    %c0_19 = arith.constant 0 : index
    %33 = vector.load %arg2[%c5, %c0_18, %c0_19] : memref<9x32x96xf32, #tpu.memory_space<vmem>>, vector<1x32x96xf32>
    %34 = vector.shape_cast %33 : vector<1x32x96xf32> to vector<32x96xf32>
    %cst_20 = arith.constant dense<0.000000e+00> : vector<64x96xf32>
    %35 = tpu.matmul %32, %34, %cst_20 {dimension_numbers = #tpu.dot_dimension_numbers<[1], [0], [0], [1], [0, 0, 1, 1], [], []>} : vector<64x32xf32>, vector<32x96xf32>, vector<64x96xf32> -> vector<64x96xf32>
    %36 = arith.addf %30, %35 : vector<64x96xf32>
    %37 = vector.extract_strided_slice %1 {offsets = [2, 0, 0], sizes = [8, 8, 32], strides = [1, 1, 1]} : vector<10x10x32xf32> to vector<8x8x32xf32>
    %38 = vector.shape_cast %37 : vector<8x8x32xf32> to vector<64x32xf32>
    %c6 = arith.constant 6 : index
    %c0_21 = arith.constant 0 : index
    %c0_22 = arith.constant 0 : index
    %39 = vector.load %arg2[%c6, %c0_21, %c0_22] : memref<9x32x96xf32, #tpu.memory_space<vmem>>, vector<1x32x96xf32>
    %40 = vector.shape_cast %39 : vector<1x32x96xf32> to vector<32x96xf32>
    %cst_23 = arith.constant dense<0.000000e+00> : vector<64x96xf32>
    %41 = tpu.matmul %38, %40, %cst_23 {dimension_numbers = #tpu.dot_dimension_numbers<[1], [0], [0], [1], [0, 0, 1, 1], [], []>} : vector<64x32xf32>, vector<32x96xf32>, vector<64x96xf32> -> vector<64x96xf32>
    %42 = arith.addf %36, %41 : vector<64x96xf32>
    %43 = vector.extract_strided_slice %1 {offsets = [2, 1, 0], sizes = [8, 8, 32], strides = [1, 1, 1]} : vector<10x10x32xf32> to vector<8x8x32xf32>
    %44 = vector.shape_cast %43 : vector<8x8x32xf32> to vector<64x32xf32>
    %c7 = arith.constant 7 : index
    %c0_24 = arith.constant 0 : index
    %c0_25 = arith.constant 0 : index
    %45 = vector.load %arg2[%c7, %c0_24, %c0_25] : memref<9x32x96xf32, #tpu.memory_space<vmem>>, vector<1x32x96xf32>
    %46 = vector.shape_cast %45 : vector<1x32x96xf32> to vector<32x96xf32>
    %cst_26 = arith.constant dense<0.000000e+00> : vector<64x96xf32>
    %47 = tpu.matmul %44, %46, %cst_26 {dimension_numbers = #tpu.dot_dimension_numbers<[1], [0], [0], [1], [0, 0, 1, 1], [], []>} : vector<64x32xf32>, vector<32x96xf32>, vector<64x96xf32> -> vector<64x96xf32>
    %48 = arith.addf %42, %47 : vector<64x96xf32>
    %49 = vector.extract_strided_slice %1 {offsets = [2, 2, 0], sizes = [8, 8, 32], strides = [1, 1, 1]} : vector<10x10x32xf32> to vector<8x8x32xf32>
    %50 = vector.shape_cast %49 : vector<8x8x32xf32> to vector<64x32xf32>
    %c8 = arith.constant 8 : index
    %c0_27 = arith.constant 0 : index
    %c0_28 = arith.constant 0 : index
    %51 = vector.load %arg2[%c8, %c0_27, %c0_28] : memref<9x32x96xf32, #tpu.memory_space<vmem>>, vector<1x32x96xf32>
    %52 = vector.shape_cast %51 : vector<1x32x96xf32> to vector<32x96xf32>
    %cst_29 = arith.constant dense<0.000000e+00> : vector<64x96xf32>
    %53 = tpu.matmul %50, %52, %cst_29 {dimension_numbers = #tpu.dot_dimension_numbers<[1], [0], [0], [1], [0, 0, 1, 1], [], []>} : vector<64x32xf32>, vector<32x96xf32>, vector<64x96xf32> -> vector<64x96xf32>
    %54 = arith.addf %48, %53 : vector<64x96xf32>
    %55 = vector.extract_strided_slice %54 {offsets = [0, 0], sizes = [64, 32], strides = [1, 1]} : vector<64x96xf32> to vector<64x32xf32>
    %c0_30 = arith.constant 0 : index
    %c0_31 = arith.constant 0 : index
    %c0_32 = arith.constant 0 : index
    %56 = vector.load %arg3[%c0_30, %c0_31, %c0_32] : memref<1x64x32xf32, #tpu.memory_space<vmem>>, vector<1x64x32xf32>
    %57 = vector.shape_cast %56 : vector<1x64x32xf32> to vector<64x32xf32>
    %58 = vector.shape_cast %55 : vector<64x32xf32> to vector<1x64x32xf32>
    tpu.vector_store %arg3[%c0_30, %c0_31, %c0_32], %58 {strides = array<i32>} : memref<1x64x32xf32, #tpu.memory_space<vmem>>, vector<1x64x32xf32>,
    %59 = vector.extract_strided_slice %54 {offsets = [0, 32], sizes = [64, 32], strides = [1, 1]} : vector<64x96xf32> to vector<64x32xf32>
    %c0_33 = arith.constant 0 : index
    %c0_34 = arith.constant 0 : index
    %c0_35 = arith.constant 0 : index
    %60 = vector.load %arg4[%c0_33, %c0_34, %c0_35] : memref<1x64x32xf32, #tpu.memory_space<vmem>>, vector<1x64x32xf32>
    %61 = vector.shape_cast %60 : vector<1x64x32xf32> to vector<64x32xf32>
    %62 = vector.shape_cast %59 : vector<64x32xf32> to vector<1x64x32xf32>
    tpu.vector_store %arg4[%c0_33, %c0_34, %c0_35], %62 {strides = array<i32>} : memref<1x64x32xf32, #tpu.memory_space<vmem>>, vector<1x64x32xf32>,
    %63 = vector.extract_strided_slice %54 {offsets = [0, 64], sizes = [64, 32], strides = [1, 1]} : vector<64x96xf32> to vector<64x32xf32>
    %c0_36 = arith.constant 0 : index
    %c0_37 = arith.constant 0 : index
    %c0_38 = arith.constant 0 : index
    %64 = vector.load %arg5[%c0_36, %c0_37, %c0_38] : memref<1x64x32xf32, #tpu.memory_space<vmem>>, vector<1x64x32xf32>
    %65 = vector.shape_cast %64 : vector<1x64x32xf32> to vector<64x32xf32>
    %66 = vector.shape_cast %63 : vector<64x32xf32> to vector<1x64x32xf32>
    tpu.vector_store %arg5[%c0_36, %c0_37, %c0_38], %66 {strides = array<i32>} : memref<1x64x32xf32, #tpu.memory_space<vmem>>, vector<1x64x32xf32>,
    return
  }
  func.func @transform_0(%arg0: i32) -> (i32, i32, i32, i32) {
    %c0_i32 = arith.constant 0 : i32
    %c0_i32_0 = arith.constant 0 : i32
    %c0_i32_1 = arith.constant 0 : i32
    %c0_i32_2 = arith.constant 0 : i32
    return %arg0, %c0_i32, %c0_i32_0, %c0_i32_1 : i32, i32, i32, i32
  }
  func.func @transform_1(%arg0: i32) -> (i32, i32, i32) {
    %c0_i32 = arith.constant 0 : i32
    %c0_i32_0 = arith.constant 0 : i32
    %c0_i32_1 = arith.constant 0 : i32
    %c0_i32_2 = arith.constant 0 : i32
    return %c0_i32, %c0_i32_0, %c0_i32_1 : i32, i32, i32
  }
  func.func @transform_2(%arg0: i32) -> (i32, i32, i32) {
    %c0_i32 = arith.constant 0 : i32
    %c0_i32_0 = arith.constant 0 : i32
    %c0_i32_1 = arith.constant 0 : i32
    return %arg0, %c0_i32, %c0_i32_0 : i32, i32, i32
  }
  func.func @transform_3(%arg0: i32) -> (i32, i32, i32) {
    %c0_i32 = arith.constant 0 : i32
    %c0_i32_0 = arith.constant 0 : i32
    %c0_i32_1 = arith.constant 0 : i32
    return %arg0, %c0_i32, %c0_i32_0 : i32, i32, i32
  }
  func.func @transform_4(%arg0: i32) -> (i32, i32, i32) {
    %c0_i32 = arith.constant 0 : i32
    %c0_i32_0 = arith.constant 0 : i32
    %c0_i32_1 = arith.constant 0 : i32
    return %arg0, %c0_i32, %c0_i32_0 : i32, i32, i32
  }
}

</mosaic_0001>

<llo_original>
// kernel: tpu_custom_call.1
$region0: #{tpu_custom_call.1}
  #allocation0 [shape = 'u32[]', space=smem, size = 0x4, offset = 0x4, fixed_abs, tag = 'smem constant byte address 0x4 - core index']
  #allocation1 [shape = 'u32[72,128]{1,0:T(1,128)}', space=vmem, size = 0x9000, scoped, tag = 'internal scratch']
  %s0 = inlined_call_operand.vmem [shape: f32[2,10,10,32], index: 0, kind: input, shape index: {}]
  %s1 = inlined_call_operand.vmem [shape: f32[9,32,96], index: 1, kind: input, shape index: {}]
  %s2 = inlined_call_operand.vmem [shape: f32[2,64,32], index: 2, kind: output, shape index: {0}]
  %s3 = inlined_call_operand.vmem [shape: f32[2,64,32], index: 3, kind: output, shape index: {1}]
  %s4 = inlined_call_operand.vmem [shape: f32[2,64,32], index: 4, kind: output, shape index: {2}]
  %5 = xla_tuple %s2, %s3, %s4
  %s6 = sld [smem:[#allocation0]]
  $region57: #{tpu_custom_call.1} parent=0
    _
  %s8 = ssub.s32 1, %s6
  %s9 = scalar_select 0, %s8, %s6
  loop: start=0, step=1, limit=4
  $region2: #{tpu_custom_call.1} parent=0 // loop_pre_header
    _
  $region3: #{tpu_custom_call.1} parent=0 // loop_header
    %s11 = sphi 0, %s15
    %p12 = scmp.ge.s32.totalorder %s11, 4
    %s21 = sphi 0, %s23
    %s24 = sphi 0, %s21
    %s25 = sphi 0, %s24
    %s41 = sphi 0, %s25
    %s45 = sphi 0, %s45
    %s47 = sphi 0, %s45
    %s48 = sphi 0, %s47
    %s62 = sphi 0, %s48
    %s68 = sphi 0, %s70
    %s71 = sphi 0, %s68
    %s72 = sphi 0, %s71
    %s88 = sphi 0, %s72
    %s94 = sphi 0, %s96
    %s97 = sphi 0, %s94
    %s98 = sphi 0, %s97
    %s114 = sphi 0, %s98
    %s120 = sphi 0, %s122
    %s123 = sphi 0, %s120
    %s124 = sphi 0, %s123
    %s140 = sphi 0, %s124
  $region4: #{tpu_custom_call.1} parent=0 // loop_header_branch
    %14 = sbr.rel (%p12) target = $region8
  $region5: #{tpu_custom_call.1} parent=0 // loop_body
    %s16 = ssub.s32 %s11, 1
    %s17 = ssub.s32 %s11, 2
    %s18 = sadd.s32 %s11, 1
    %s19 = ssub.s32 %s11, %s18
    %p20 = scmp.eq.s32.totalorder %s19, 0
    %s22 = sadd.s32 %s21, 1
    %s23 = scalar_select %p20, %s21, %s22
    %p26 = pneg %p20
    %p27 = scmp.eq.s32.totalorder %s11, 1
    %p28 = por %p26, %p27
    %p29 = scmp.ne.s32.totalorder %s21, %s24
    %p30 = scmp.eq.s32.totalorder %s11, 0
    %p31 = por %p29, %p30
    %p32 = scmp.ne.s32.totalorder %s21, %s24
    %p33 = scmp.eq.s32.totalorder %s16, 1
    %p34 = por %p32, %p33
    %p35 = scmp.ne.s32.totalorder %s24, %s25
    %p36 = scmp.eq.s32.totalorder %s16, 0
    %p37 = por %p35, %p36
    %p38 = scmp.ne.s32.totalorder %s24, %s25
    %p39 = scmp.eq.s32.totalorder %s17, 1
    %p40 = por %p38, %p39
    %p42 = scmp.ne.s32.totalorder %s25, %s41
    %p43 = scmp.eq.s32.totalorder %s17, 0
    %p44 = por %p42, %p43
    %s46 = sadd.s32 %s45, 1
    %p49 = scmp.eq.s32.totalorder %s11, 1
    %p50 = scmp.ne.s32.totalorder %s45, %s47
    %p51 = scmp.eq.s32.totalorder %s11, 0
    %p52 = por %p50, %p51
    %p53 = scmp.ne.s32.totalorder %s45, %s47
    %p54 = scmp.eq.s32.totalorder %s16, 1
    %p55 = por %p53, %p54
    %p56 = scmp.ne.s32.totalorder %s47, %s48
    %p57 = scmp.eq.s32.totalorder %s16, 0
    %p58 = por %p56, %p57
    %p59 = scmp.ne.s32.totalorder %s47, %s48
    %p60 = scmp.eq.s32.totalorder %s17, 1
    %p61 = por %p59, %p60
    %p63 = scmp.ne.s32.totalorder %s48, %s62
    %p64 = scmp.eq.s32.totalorder %s17, 0
    %p65 = por %p63, %p64
    %s66 = ssub.s32 %s11, %s18
    %p67 = scmp.eq.s32.totalorder %s66, 0
    %s69 = sadd.s32 %s68, 1
    %s70 = scalar_select %p67, %s68, %s69
    %p73 = pneg %p67
    %p74 = scmp.eq.s32.totalorder %s11, 1
    %p75 = por %p73, %p74
    %p76 = scmp.ne.s32.totalorder %s68, %s71
    %p77 = scmp.eq.s32.totalorder %s11, 0
    %p78 = por %p76, %p77
    %p79 = scmp.ne.s32.totalorder %s68, %s71
    %p80 = scmp.eq.s32.totalorder %s16, 1
    %p81 = por %p79, %p80
    %p82 = scmp.ne.s32.totalorder %s71, %s72
    %p83 = scmp.eq.s32.totalorder %s16, 0
    %p84 = por %p82, %p83
    %p85 = scmp.ne.s32.totalorder %s71, %s72
    %p86 = scmp.eq.s32.totalorder %s17, 1
    %p87 = por %p85, %p86
    %p89 = scmp.ne.s32.totalorder %s72, %s88
    %p90 = scmp.eq.s32.totalorder %s17, 0
    %p91 = por %p89, %p90
    %s92 = ssub.s32 %s11, %s18
    %p93 = scmp.eq.s32.totalorder %s92, 0
    %s95 = sadd.s32 %s94, 1
    %s96 = scalar_select %p93, %s94, %s95
    %p99 = pneg %p93
    %p100 = scmp.eq.s32.totalorder %s11, 1
    %p101 = por %p99, %p100
    %p102 = scmp.ne.s32.totalorder %s94, %s97
    %p103 = scmp.eq.s32.totalorder %s11, 0
    %p104 = por %p102, %p103
    %p105 = scmp.ne.s32.totalorder %s94, %s97
    %p106 = scmp.eq.s32.totalorder %s16, 1
    %p107 = por %p105, %p106
    %p108 = scmp.ne.s32.totalorder %s97, %s98
    %p109 = scmp.eq.s32.totalorder %s16, 0
    %p110 = por %p108, %p109
    %p111 = scmp.ne.s32.totalorder %s97, %s98
    %p112 = scmp.eq.s32.totalorder %s17, 1
    %p113 = por %p111, %p112
    %p115 = scmp.ne.s32.totalorder %s98, %s114
    %p116 = scmp.eq.s32.totalorder %s17, 0
    %p117 = por %p115, %p116
    %s118 = ssub.s32 %s11, %s18
    %p119 = scmp.eq.s32.totalorder %s118, 0
    %s121 = sadd.s32 %s120, 1
    %s122 = scalar_select %p119, %s120, %s121
    %p125 = pneg %p119
    %p126 = scmp.eq.s32.totalorder %s11, 1
    %p127 = por %p125, %p126
    %p128 = scmp.ne.s32.totalorder %s120, %s123
    %p129 = scmp.eq.s32.totalorder %s11, 0
    %p130 = por %p128, %p129
    %p131 = scmp.ne.s32.totalorder %s120, %s123
    %p132 = scmp.eq.s32.totalorder %s16, 1
    %p133 = por %p131, %p132
    %p134 = scmp.ne.s32.totalorder %s123, %s124
    %p135 = scmp.eq.s32.totalorder %s16, 0
    %p136 = por %p134, %p135
    %p137 = scmp.ne.s32.totalorder %s123, %s124
    %p138 = scmp.eq.s32.totalorder %s17, 1
    %p139 = por %p137, %p138
    %p141 = scmp.ne.s32.totalorder %s124, %s140
    %p142 = scmp.eq.s32.totalorder %s17, 0
    %p143 = por %p141, %p142
    %p144 = scmp.le.s32.totalorder 1, %s11
    %p145 = scmp.lt.s32.totalorder %s11, 3
    %p146 = pnand %p144, %p145
    %p147 = pneg %p146
    // Predicated region
    $region9: #{tpu_custom_call.1} parent=5 // pred_check
      _
    $region10: #{tpu_custom_call.1} parent=5 // pred_check_branch
      %149 = sbr.rel (%p146) target = $region12
    $region11: #{tpu_custom_call.1} parent=5 // pred_region
      %s150 = ssub.s32 %s11, 1
      // Predicated region
      $region13: #{tpu_custom_call.1} parent=11 // pred_check
        %p151 = pneg %p58
      $region14: #{tpu_custom_call.1} parent=11 // pred_check_branch
        %153 = sbr.rel (%p151) target = $region16
      $region15: #{tpu_custom_call.1} parent=11 // pred_region
        _
      $region16: #{tpu_custom_call.1} parent=11 // pred_fallthru
        _
    $region12: #{tpu_custom_call.1} parent=5 // pred_fallthru
      _
    %p154 = scmp.lt.s32.totalorder %s11, 2
    // Predicated region
    $region17: #{tpu_custom_call.1} parent=5 // pred_check
      %p155 = pneg %p154
    $region18: #{tpu_custom_call.1} parent=5 // pred_check_branch
      %157 = sbr.rel (%p155) target = $region20
    $region19: #{tpu_custom_call.1} parent=5 // pred_region
      // Predicated region
      $region21: #{tpu_custom_call.1} parent=19 // pred_check
        %p158 = pneg %p31
      $region22: #{tpu_custom_call.1} parent=19 // pred_check_branch
        %160 = sbr.rel (%p158) target = $region24
      $region23: #{tpu_custom_call.1} parent=19 // pred_region
        %p161 = scmp.lt.s32.totalorder %s11, 1
        %s162 = scalar_select %p161, %s11, 1
        %s163 = smul.addr %s162, 20
        %s164 = smul.addr %s163, 8
        %s165 = scalar_lea.vmem %s0, %s164
      $region24: #{tpu_custom_call.1} parent=19 // pred_fallthru
        _
    $region20: #{tpu_custom_call.1} parent=5 // pred_fallthru
      _
    %p166 = scmp.le.s32.totalorder 1, %s11
    %p167 = scmp.lt.s32.totalorder %s11, 3
    %p168 = pnand %p166, %p167
    %p169 = pneg %p168
    // Predicated region
    $region25: #{tpu_custom_call.1} parent=5 // pred_check
      _
    $region26: #{tpu_custom_call.1} parent=5 // pred_check_branch
      %171 = sbr.rel (%p168) target = $region28
    $region27: #{tpu_custom_call.1} parent=5 // pred_region
      %s172 = ssub.s32 %s11, 1
      %p173 = scmp.lt.s32.totalorder %s16, 1
      %s174 = scalar_select %p173, %s16, 1
      %s175 = smul.addr %s174, 20
      %s176 = smul.addr %s175, 8
      %s177 = scalar_lea.vmem %s0, %s176
      %p178 = pneg %p37
      %p179 = pneg %p34
      %p180 = pneg %p58
      %p181 = pneg %p55
      %p182 = pneg %p84
      %p183 = pneg %p81
      %p184 = scmp.lt.s32.totalorder %s16, 1
      %s185 = scalar_select %p184, %s16, 1
      %s186 = smul.addr %s185, 8
      %s187 = smul.addr %s186, 8
      %s188 = scalar_lea.vmem %s2, %s187
      %p189 = pneg %p110
      %p190 = pneg %p107
      %p191 = scmp.lt.s32.totalorder %s16, 1
      %s192 = scalar_select %p191, %s16, 1
      %s193 = smul.addr %s192, 8
      %s194 = smul.addr %s193, 8
      %s195 = scalar_lea.vmem %s3, %s194
      %p196 = pneg %p136
      %p197 = pneg %p133
      %p198 = scmp.lt.s32.totalorder %s16, 1
      %s199 = scalar_select %p198, %s16, 1
      %s200 = smul.addr %s199, 8
      %s201 = smul.addr %s200, 8
      %s202 = scalar_lea.vmem %s4, %s201
      %p203 = scmp.lt.s32.totalorder %s16, 1
      %s204 = scalar_select %p203, %s16, 1
      %s205 = smul.addr %s204, 20
      %s206 = smul.addr %s205, 8
      %s207 = scalar_lea.vmem %s0, %s206
      %p208 = scmp.lt.s32.totalorder %s16, 1
      %s209 = scalar_select %p208, %s16, 1
      %s210 = smul.addr %s209, 8
      %s211 = smul.addr %s210, 8
      %s212 = scalar_lea.vmem %s2, %s211
      %p213 = scmp.lt.s32.totalorder %s16, 1
      %s214 = scalar_select %p213, %s16, 1
      %s215 = smul.addr %s214, 8
      %s216 = smul.addr %s215, 8
      %s217 = scalar_lea.vmem %s3, %s216
      %p218 = scmp.lt.s32.totalorder %s16, 1
      %s219 = scalar_select %p218, %s16, 1
      %s220 = smul.addr %s219, 8
      %s221 = smul.addr %s220, 8
      %s222 = scalar_lea.vmem %s4, %s221
      %v223 = vld [vmem:[%s207] sm:$0xff]
      %v224 = vld [vmem:[%s207 + $0x8] sm:$0x3]
      %v225 = vld [vmem:[%s207 + $0x10] sm:$0xff]
      %v226 = vld [vmem:[%s207 + $0x18] sm:$0x3]
      %v227 = vld [vmem:[%s207 + $0x20] sm:$0xff]
      %v228 = vld [vmem:[%s207 + $0x28] sm:$0x3]
      %v229 = vld [vmem:[%s207 + $0x30] sm:$0xff]
      %v230 = vld [vmem:[%s207 + $0x38] sm:$0x3]
      %v231 = vld [vmem:[%s207 + $0x40] sm:$0xff]
      %v232 = vld [vmem:[%s207 + $0x48] sm:$0x3]
      %v233 = vld [vmem:[%s207 + $0x50] sm:$0xff]
      %v234 = vld [vmem:[%s207 + $0x58] sm:$0x3]
      %v235 = vld [vmem:[%s207 + $0x60] sm:$0xff]
      %v236 = vld [vmem:[%s207 + $0x68] sm:$0x3]
      %v237 = vld [vmem:[%s207 + $0x70] sm:$0xff]
      %v238 = vld [vmem:[%s207 + $0x78] sm:$0x3]
      %v239 = vld [vmem:[%s207 + $0x80] sm:$0xff]
      %v240 = vld [vmem:[%s207 + $0x88] sm:$0x3]
      %v241 = vld [vmem:[%s207 + $0x90] sm:$0xff]
      %v242 = vld [vmem:[%s207 + $0x98] sm:$0x3]
      %v243 = vld [vmem:[%s1] sm:$0xff]
      %v244 = vld [vmem:[%s1 + $0x8] sm:$0xff]
      %v245 = vld [vmem:[%s1 + $0x10] sm:$0xff]
      %v246 = vld [vmem:[%s1 + $0x18] sm:$0xff]
      %vm263 = vcmask 1046528
      %v264 = vrot.slane %v223, 1
      %v265 = vrot.slane %v224, 1
      %v266 = vsel %vm263, %v264, %v265
      %v267 = vrot.slane %v225, 1
      %v268 = vrot.slane %v226, 1
      %v269 = vsel %vm263, %v267, %v268
      %v270 = vrot.slane %v227, 1
      %v271 = vrot.slane %v228, 1
      %v272 = vsel %vm263, %v270, %v271
      %v273 = vrot.slane %v229, 1
      %v274 = vrot.slane %v230, 1
      %v275 = vsel %vm263, %v273, %v274
      %v276 = vrot.slane %v231, 1
      %v277 = vrot.slane %v232, 1
      %v278 = vsel %vm263, %v276, %v277
      %v279 = vrot.slane %v233, 1
      %v280 = vrot.slane %v234, 1
      %v281 = vsel %vm263, %v279, %v280
      %v282 = vrot.slane %v235, 1
      %v283 = vrot.slane %v236, 1
      %v284 = vsel %vm263, %v282, %v283
      %v285 = vrot.slane %v237, 1
      %v286 = vrot.slane %v238, 1
      %v287 = vsel %vm263, %v285, %v286
      %s288 = scalar_lea.vmem %s1, 32
      %v289 = vld [vmem:[%s288] sm:$0xff]
      %v290 = vld [vmem:[%s288 + $0x8] sm:$0xff]
      %v291 = vld [vmem:[%s288 + $0x10] sm:$0xff]
      %v292 = vld [vmem:[%s288 + $0x18] sm:$0xff]
      %vm293 = vcmask 261120
      %v294 = vsel %vm293, %v266, 0
      %v296 = vsel %vm293, %v269, 0
      %v298 = vsel %vm293, %v272, 0
      %v300 = vsel %vm293, %v275, 0
      %v302 = vsel %vm293, %v278, 0
      %v304 = vsel %vm293, %v281, 0
      %v306 = vsel %vm293, %v284, 0
      %v308 = vsel %vm293, %v287, 0
      %310 = vmatpush.msra.mxu0 0.0
      %311 = vmatpush.msra.mxu0 0.0
      %312 = vmatpush.msra.mxu0 0.0
      %313 = vmatpush.msra.mxu0 0.0
      %314 = vmatpush.msra.mxu0 0.0
      %315 = vmatpush.msra.mxu0 0.0
      %316 = vmatpush.msra.mxu0 0.0
      %317 = vmatpush.msra.mxu0 0.0
      %318 = vmatpush.msra.mxu0 0.0
      %319 = vmatpush.msra.mxu0 0.0
      %320 = vmatpush.msra.mxu0 0.0
      %321 = vmatpush.msra.mxu0 0.0
      %322 = vmatpush.msra.mxu0 %v292
      %323 = vmatpush.msra.mxu0 %v291
      %324 = vmatpush.msra.mxu0 %v290
      %325 = vmatpush.msra.mxu0 %v289
      %326 = vmatmul.f32.gmra.mxu0 %v294
      %v327 = vpop.f32.mrf.mxu0
      %v328 = vadd.f32 0.0, %v327
      %329 = vmatmul.f32.gmra.mxu0 %v296
      %v330 = vpop.f32.mrf.mxu0
      %v331 = vadd.f32 0.0, %v330
      %332 = vmatmul.f32.gmra.mxu0 %v298
      %v333 = vpop.f32.mrf.mxu0
      %v334 = vadd.f32 0.0, %v333
      %335 = vmatmul.f32.gmra.mxu0 %v300
      %v336 = vpop.f32.mrf.mxu0
      %v337 = vadd.f32 0.0, %v336
      %338 = vmatmul.f32.gmra.mxu0 %v302
      %v339 = vpop.f32.mrf.mxu0
      %v340 = vadd.f32 0.0, %v339
      %341 = vmatmul.f32.gmra.mxu0 %v304
      %v342 = vpop.f32.mrf.mxu0
      %v343 = vadd.f32 0.0, %v342
      %344 = vmatmul.f32.gmra.mxu0 %v306
      %v345 = vpop.f32.mrf.mxu0
      %v346 = vadd.f32 0.0, %v345
      %347 = vmatmul.f32.gmra.mxu0 %v308
      %v348 = vpop.f32.mrf.mxu0
      %v349 = vadd.f32 0.0, %v348
      %350 = vdwg.mxu0
      %v351 = vsel %vm293, %v223, 0
      %v353 = vsel %vm293, %v225, 0
      %v355 = vsel %vm293, %v227, 0
      %v357 = vsel %vm293, %v229, 0
      %v359 = vsel %vm293, %v231, 0
      %v361 = vsel %vm293, %v233, 0
      %v363 = vsel %vm293, %v235, 0
      %v365 = vsel %vm293, %v237, 0
      %367 = vmatpush.msra.mxu0 0.0
      %368 = vmatpush.msra.mxu0 0.0
      %369 = vmatpush.msra.mxu0 0.0
      %370 = vmatpush.msra.mxu0 0.0
      %371 = vmatpush.msra.mxu0 0.0
      %372 = vmatpush.msra.mxu0 0.0
      %373 = vmatpush.msra.mxu0 0.0
      %374 = vmatpush.msra.mxu0 0.0
      %375 = vmatpush.msra.mxu0 0.0
      %376 = vmatpush.msra.mxu0 0.0
      %377 = vmatpush.msra.mxu0 0.0
      %378 = vmatpush.msra.mxu0 0.0
      %379 = vmatpush.msra.mxu0 %v246
      %380 = vmatpush.msra.mxu0 %v245
      %381 = vmatpush.msra.mxu0 %v244
      %382 = vmatpush.msra.mxu0 %v243
      %383 = vmatmul.f32.gmra.mxu0 %v351
      %v384 = vpop.f32.mrf.mxu0
      %v385 = vadd.f32 %v328, %v384
      %386 = vmatmul.f32.gmra.mxu0 %v353
      %v387 = vpop.f32.mrf.mxu0
      %v388 = vadd.f32 %v331, %v387
      %389 = vmatmul.f32.gmra.mxu0 %v355
      %v390 = vpop.f32.mrf.mxu0
      %v391 = vadd.f32 %v334, %v390
      %392 = vmatmul.f32.gmra.mxu0 %v357
      %v393 = vpop.f32.mrf.mxu0
      %v394 = vadd.f32 %v337, %v393
      %395 = vmatmul.f32.gmra.mxu0 %v359
      %v396 = vpop.f32.mrf.mxu0
      %v397 = vadd.f32 %v340, %v396
      %398 = vmatmul.f32.gmra.mxu0 %v361
      %v399 = vpop.f32.mrf.mxu0
      %v400 = vadd.f32 %v343, %v399
      %401 = vmatmul.f32.gmra.mxu0 %v363
      %v402 = vpop.f32.mrf.mxu0
      %v403 = vadd.f32 %v346, %v402
      %404 = vmatmul.f32.gmra.mxu0 %v365
      %v405 = vpop.f32.mrf.mxu0
      %v406 = vadd.f32 %v349, %v405
      %407 = vdwg.mxu0
      %vm408 = vcmask 1045504
      %v409 = vrot.slane %v223, 2
      %v410 = vrot.slane %v224, 2
      %v411 = vsel %vm408, %v409, %v410
      %v412 = vrot.slane %v225, 2
      %v413 = vrot.slane %v226, 2
      %v414 = vsel %vm408, %v412, %v413
      %v415 = vrot.slane %v227, 2
      %v416 = vrot.slane %v228, 2
      %v417 = vsel %vm408, %v415, %v416
      %v418 = vrot.slane %v229, 2
      %v419 = vrot.slane %v230, 2
      %v420 = vsel %vm408, %v418, %v419
      %v421 = vrot.slane %v231, 2
      %v422 = vrot.slane %v232, 2
      %v423 = vsel %vm408, %v421, %v422
      %v424 = vrot.slane %v233, 2
      %v425 = vrot.slane %v234, 2
      %v426 = vsel %vm408, %v424, %v425
      %v427 = vrot.slane %v235, 2
      %v428 = vrot.slane %v236, 2
      %v429 = vsel %vm408, %v427, %v428
      %v430 = vrot.slane %v237, 2
      %v431 = vrot.slane %v238, 2
      %v432 = vsel %vm408, %v430, %v431
      %s433 = scalar_lea.vmem %s1, 64
      %v434 = vld [vmem:[%s433] sm:$0xff]
      %v435 = vld [vmem:[%s433 + $0x8] sm:$0xff]
      %v436 = vld [vmem:[%s433 + $0x10] sm:$0xff]
      %v437 = vld [vmem:[%s433 + $0x18] sm:$0xff]
      %v438 = vsel %vm293, %v411, 0
      %v440 = vsel %vm293, %v414, 0
      %v442 = vsel %vm293, %v417, 0
      %v444 = vsel %vm293, %v420, 0
      %v446 = vsel %vm293, %v423, 0
      %v448 = vsel %vm293, %v426, 0
      %v450 = vsel %vm293, %v429, 0
      %v452 = vsel %vm293, %v432, 0
      %454 = vmatpush.msra.mxu0 0.0
      %455 = vmatpush.msra.mxu0 0.0
      %456 = vmatpush.msra.mxu0 0.0
      %457 = vmatpush.msra.mxu0 0.0
      %458 = vmatpush.msra.mxu0 0.0
      %459 = vmatpush.msra.mxu0 0.0
      %460 = vmatpush.msra.mxu0 0.0
      %461 = vmatpush.msra.mxu0 0.0
      %462 = vmatpush.msra.mxu0 0.0
      %463 = vmatpush.msra.mxu0 0.0
      %464 = vmatpush.msra.mxu0 0.0
      %465 = vmatpush.msra.mxu0 0.0
      %466 = vmatpush.msra.mxu0 %v437
      %467 = vmatpush.msra.mxu0 %v436
      %468 = vmatpush.msra.mxu0 %v435
      %469 = vmatpush.msra.mxu0 %v434
      %470 = vmatmul.f32.gmra.mxu0 %v438
      %v471 = vpop.f32.mrf.mxu0
      %v472 = vadd.f32 0.0, %v471
      %473 = vmatmul.f32.gmra.mxu0 %v440
      %v474 = vpop.f32.mrf.mxu0
      %v475 = vadd.f32 0.0, %v474
      %476 = vmatmul.f32.gmra.mxu0 %v442
      %v477 = vpop.f32.mrf.mxu0
      %v478 = vadd.f32 0.0, %v477
      %479 = vmatmul.f32.gmra.mxu0 %v444
      %v480 = vpop.f32.mrf.mxu0
      %v481 = vadd.f32 0.0, %v480
      %482 = vmatmul.f32.gmra.mxu0 %v446
      %v483 = vpop.f32.mrf.mxu0
      %v484 = vadd.f32 0.0, %v483
      %485 = vmatmul.f32.gmra.mxu0 %v448
      %v486 = vpop.f32.mrf.mxu0
      %v487 = vadd.f32 0.0, %v486
      %488 = vmatmul.f32.gmra.mxu0 %v450
      %v489 = vpop.f32.mrf.mxu0
      %v490 = vadd.f32 0.0, %v489
      %491 = vmatmul.f32.gmra.mxu0 %v452
      %v492 = vpop.f32.mrf.mxu0
      %v493 = vadd.f32 0.0, %v492
      %494 = vdwg.mxu0
      %v495 = vadd.f32 %v385, %v472
      %v496 = vadd.f32 %v388, %v475
      %v497 = vadd.f32 %v391, %v478
      %v498 = vadd.f32 %v394, %v481
      %v499 = vadd.f32 %v397, %v484
      %v500 = vadd.f32 %v400, %v487
      %v501 = vadd.f32 %v403, %v490
      %v502 = vadd.f32 %v406, %v493
      %s503 = scalar_lea.vmem %s1, 96
      %v504 = vld [vmem:[%s503] sm:$0xff]
      %v505 = vld [vmem:[%s503 + $0x8] sm:$0xff]
      %v506 = vld [vmem:[%s503 + $0x10] sm:$0xff]
      %v507 = vld [vmem:[%s503 + $0x18] sm:$0xff]
      %v509 = vsel %vm293, %v239, 0
      %511 = vmatpush.msra.mxu0 0.0
      %512 = vmatpush.msra.mxu0 0.0
      %513 = vmatpush.msra.mxu0 0.0
      %514 = vmatpush.msra.mxu0 0.0
      %515 = vmatpush.msra.mxu0 0.0
      %516 = vmatpush.msra.mxu0 0.0
      %517 = vmatpush.msra.mxu0 0.0
      %518 = vmatpush.msra.mxu0 0.0
      %519 = vmatpush.msra.mxu0 0.0
      %520 = vmatpush.msra.mxu0 0.0
      %521 = vmatpush.msra.mxu0 0.0
      %522 = vmatpush.msra.mxu0 0.0
      %523 = vmatpush.msra.mxu0 %v507
      %524 = vmatpush.msra.mxu0 %v506
      %525 = vmatpush.msra.mxu0 %v505
      %526 = vmatpush.msra.mxu0 %v504
      %527 = vmatmul.f32.gmra.mxu0 %v353
      %v528 = vpop.f32.mrf.mxu0
      %v529 = vadd.f32 0.0, %v528
      %530 = vmatmul.f32.gmra.mxu0 %v355
      %v531 = vpop.f32.mrf.mxu0
      %v532 = vadd.f32 0.0, %v531
      %533 = vmatmul.f32.gmra.mxu0 %v357
      %v534 = vpop.f32.mrf.mxu0
      %v535 = vadd.f32 0.0, %v534
      %536 = vmatmul.f32.gmra.mxu0 %v359
      %v537 = vpop.f32.mrf.mxu0
      %v538 = vadd.f32 0.0, %v537
      %539 = vmatmul.f32.gmra.mxu0 %v361
      %v540 = vpop.f32.mrf.mxu0
      %v541 = vadd.f32 0.0, %v540
      %542 = vmatmul.f32.gmra.mxu0 %v363
      %v543 = vpop.f32.mrf.mxu0
      %v544 = vadd.f32 0.0, %v543
      %545 = vmatmul.f32.gmra.mxu0 %v365
      %v546 = vpop.f32.mrf.mxu0
      %v547 = vadd.f32 0.0, %v546
      %548 = vmatmul.f32.gmra.mxu0 %v509
      %v549 = vpop.f32.mrf.mxu0
      %v550 = vadd.f32 0.0, %v549
      %551 = vdwg.mxu0
      %v552 = vadd.f32 %v495, %v529
      %v553 = vadd.f32 %v496, %v532
      %v554 = vadd.f32 %v497, %v535
      %v555 = vadd.f32 %v498, %v538
      %v556 = vadd.f32 %v499, %v541
      %v557 = vadd.f32 %v500, %v544
      %v558 = vadd.f32 %v501, %v547
      %v559 = vadd.f32 %v502, %v550
      %v561 = vrot.slane %v239, 1
      %v562 = vrot.slane %v240, 1
      %v563 = vsel %vm263, %v561, %v562
      %s564 = scalar_lea.vmem %s1, 128
      %v565 = vld [vmem:[%s564] sm:$0xff]
      %v566 = vld [vmem:[%s564 + $0x8] sm:$0xff]
      %v567 = vld [vmem:[%s564 + $0x10] sm:$0xff]
      %v568 = vld [vmem:[%s564 + $0x18] sm:$0xff]
      %v569 = vsel %vm293, %v563, 0
      %571 = vmatpush.msra.mxu0 0.0
      %572 = vmatpush.msra.mxu0 0.0
      %573 = vmatpush.msra.mxu0 0.0
      %574 = vmatpush.msra.mxu0 0.0
      %575 = vmatpush.msra.mxu0 0.0
      %576 = vmatpush.msra.mxu0 0.0
      %577 = vmatpush.msra.mxu0 0.0
      %578 = vmatpush.msra.mxu0 0.0
      %579 = vmatpush.msra.mxu0 0.0
      %580 = vmatpush.msra.mxu0 0.0
      %581 = vmatpush.msra.mxu0 0.0
      %582 = vmatpush.msra.mxu0 0.0
      %583 = vmatpush.msra.mxu0 %v568
      %584 = vmatpush.msra.mxu0 %v567
      %585 = vmatpush.msra.mxu0 %v566
      %586 = vmatpush.msra.mxu0 %v565
      %587 = vmatmul.f32.gmra.mxu0 %v296
      %v588 = vpop.f32.mrf.mxu0
      %v589 = vadd.f32 0.0, %v588
      %590 = vmatmul.f32.gmra.mxu0 %v298
      %v591 = vpop.f32.mrf.mxu0
      %v592 = vadd.f32 0.0, %v591
      %593 = vmatmul.f32.gmra.mxu0 %v300
      %v594 = vpop.f32.mrf.mxu0
      %v595 = vadd.f32 0.0, %v594
      %596 = vmatmul.f32.gmra.mxu0 %v302
      %v597 = vpop.f32.mrf.mxu0
      %v598 = vadd.f32 0.0, %v597
      %599 = vmatmul.f32.gmra.mxu0 %v304
      %v600 = vpop.f32.mrf.mxu0
      %v601 = vadd.f32 0.0, %v600
      %602 = vmatmul.f32.gmra.mxu0 %v306
      %v603 = vpop.f32.mrf.mxu0
      %v604 = vadd.f32 0.0, %v603
      %605 = vmatmul.f32.gmra.mxu0 %v308
      %v606 = vpop.f32.mrf.mxu0
      %v607 = vadd.f32 0.0, %v606
      %608 = vmatmul.f32.gmra.mxu0 %v569
      %v609 = vpop.f32.mrf.mxu0
      %v610 = vadd.f32 0.0, %v609
      %611 = vdwg.mxu0
      %v612 = vadd.f32 %v552, %v589
      %v613 = vadd.f32 %v553, %v592
      %v614 = vadd.f32 %v554, %v595
      %v615 = vadd.f32 %v555, %v598
      %v616 = vadd.f32 %v556, %v601
      %v617 = vadd.f32 %v557, %v604
      %v618 = vadd.f32 %v558, %v607
      %v619 = vadd.f32 %v559, %v610
      %v620 = vrot.slane %v239, 2
      %v621 = vrot.slane %v240, 2
      %v622 = vsel %vm408, %v620, %v621
      %s623 = scalar_lea.vmem %s1, 160
      %v624 = vld [vmem:[%s623] sm:$0xff]
      %v625 = vld [vmem:[%s623 + $0x8] sm:$0xff]
      %v626 = vld [vmem:[%s623 + $0x10] sm:$0xff]
      %v627 = vld [vmem:[%s623 + $0x18] sm:$0xff]
      %v628 = vsel %vm293, %v622, 0
      %630 = vmatpush.msra.mxu0 0.0
      %631 = vmatpush.msra.mxu0 0.0
      %632 = vmatpush.msra.mxu0 0.0
      %633 = vmatpush.msra.mxu0 0.0
      %634 = vmatpush.msra.mxu0 0.0
      %635 = vmatpush.msra.mxu0 0.0
      %636 = vmatpush.msra.mxu0 0.0
      %637 = vmatpush.msra.mxu0 0.0
      %638 = vmatpush.msra.mxu0 0.0
      %639 = vmatpush.msra.mxu0 0.0
      %640 = vmatpush.msra.mxu0 0.0
      %641 = vmatpush.msra.mxu0 0.0
      %642 = vmatpush.msra.mxu0 %v627
      %643 = vmatpush.msra.mxu0 %v626
      %644 = vmatpush.msra.mxu0 %v625
      %645 = vmatpush.msra.mxu0 %v624
      %646 = vmatmul.f32.gmra.mxu0 %v440
      %v647 = vpop.f32.mrf.mxu0
      %v648 = vadd.f32 0.0, %v647
      %649 = vmatmul.f32.gmra.mxu0 %v442
      %v650 = vpop.f32.mrf.mxu0
      %v651 = vadd.f32 0.0, %v650
      %652 = vmatmul.f32.gmra.mxu0 %v444
      %v653 = vpop.f32.mrf.mxu0
      %v654 = vadd.f32 0.0, %v653
      %655 = vmatmul.f32.gmra.mxu0 %v446
      %v656 = vpop.f32.mrf.mxu0
      %v657 = vadd.f32 0.0, %v656
      %658 = vmatmul.f32.gmra.mxu0 %v448
      %v659 = vpop.f32.mrf.mxu0
      %v660 = vadd.f32 0.0, %v659
      %661 = vmatmul.f32.gmra.mxu0 %v450
      %v662 = vpop.f32.mrf.mxu0
      %v663 = vadd.f32 0.0, %v662
      %664 = vmatmul.f32.gmra.mxu0 %v452
      %v665 = vpop.f32.mrf.mxu0
      %v666 = vadd.f32 0.0, %v665
      %667 = vmatmul.f32.gmra.mxu0 %v628
      %v668 = vpop.f32.mrf.mxu0
      %v669 = vadd.f32 0.0, %v668
      %670 = vdwg.mxu0
      %v671 = vadd.f32 %v612, %v648
      %v672 = vadd.f32 %v613, %v651
      %v673 = vadd.f32 %v614, %v654
      %v674 = vadd.f32 %v615, %v657
      %v675 = vadd.f32 %v616, %v660
      %v676 = vadd.f32 %v617, %v663
      %v677 = vadd.f32 %v618, %v666
      %v678 = vadd.f32 %v619, %v669
      %s679 = scalar_lea.vmem %s1, 192
      %v680 = vld [vmem:[%s679] sm:$0xff]
      %v681 = vld [vmem:[%s679 + $0x8] sm:$0xff]
      %v682 = vld [vmem:[%s679 + $0x10] sm:$0xff]
      %v683 = vld [vmem:[%s679 + $0x18] sm:$0xff]
      %v685 = vsel %vm293, %v241, 0
      %687 = vmatpush.msra.mxu0 0.0
      %688 = vmatpush.msra.mxu0 0.0
      %689 = vmatpush.msra.mxu0 0.0
      %690 = vmatpush.msra.mxu0 0.0
      %691 = vmatpush.msra.mxu0 0.0
      %692 = vmatpush.msra.mxu0 0.0
      %693 = vmatpush.msra.mxu0 0.0
      %694 = vmatpush.msra.mxu0 0.0
      %695 = vmatpush.msra.mxu0 0.0
      %696 = vmatpush.msra.mxu0 0.0
      %697 = vmatpush.msra.mxu0 0.0
      %698 = vmatpush.msra.mxu0 0.0
      %699 = vmatpush.msra.mxu0 %v683
      %700 = vmatpush.msra.mxu0 %v682
      %701 = vmatpush.msra.mxu0 %v681
      %702 = vmatpush.msra.mxu0 %v680
      %703 = vmatmul.f32.gmra.mxu0 %v355
      %v704 = vpop.f32.mrf.mxu0
      %v705 = vadd.f32 0.0, %v704
      %706 = vmatmul.f32.gmra.mxu0 %v357
      %v707 = vpop.f32.mrf.mxu0
      %v708 = vadd.f32 0.0, %v707
      %709 = vmatmul.f32.gmra.mxu0 %v359
      %v710 = vpop.f32.mrf.mxu0
      %v711 = vadd.f32 0.0, %v710
      %712 = vmatmul.f32.gmra.mxu0 %v361
      %v713 = vpop.f32.mrf.mxu0
      %v714 = vadd.f32 0.0, %v713
      %715 = vmatmul.f32.gmra.mxu0 %v363
      %v716 = vpop.f32.mrf.mxu0
      %v717 = vadd.f32 0.0, %v716
      %718 = vmatmul.f32.gmra.mxu0 %v365
      %v719 = vpop.f32.mrf.mxu0
      %v720 = vadd.f32 0.0, %v719
      %721 = vmatmul.f32.gmra.mxu0 %v509
      %v722 = vpop.f32.mrf.mxu0
      %v723 = vadd.f32 0.0, %v722
      %724 = vmatmul.f32.gmra.mxu0 %v685
      %v725 = vpop.f32.mrf.mxu0
      %v726 = vadd.f32 0.0, %v725
      %727 = vdwg.mxu0
      %v728 = vadd.f32 %v671, %v705
      %v729 = vadd.f32 %v672, %v708
      %v730 = vadd.f32 %v673, %v711
      %v731 = vadd.f32 %v674, %v714
      %v732 = vadd.f32 %v675, %v717
      %v733 = vadd.f32 %v676, %v720
      %v734 = vadd.f32 %v677, %v723
      %v735 = vadd.f32 %v678, %v726
      %v737 = vrot.slane %v241, 1
      %v738 = vrot.slane %v242, 1
      %v739 = vsel %vm263, %v737, %v738
      %s740 = scalar_lea.vmem %s1, 224
      %v741 = vld [vmem:[%s740] sm:$0xff]
      %v742 = vld [vmem:[%s740 + $0x8] sm:$0xff]
      %v743 = vld [vmem:[%s740 + $0x10] sm:$0xff]
      %v744 = vld [vmem:[%s740 + $0x18] sm:$0xff]
      %v745 = vsel %vm293, %v739, 0
      %747 = vmatpush.msra.mxu0 0.0
      %748 = vmatpush.msra.mxu0 0.0
      %749 = vmatpush.msra.mxu0 0.0
      %750 = vmatpush.msra.mxu0 0.0
      %751 = vmatpush.msra.mxu0 0.0
      %752 = vmatpush.msra.mxu0 0.0
      %753 = vmatpush.msra.mxu0 0.0
      %754 = vmatpush.msra.mxu0 0.0
      %755 = vmatpush.msra.mxu0 0.0
      %756 = vmatpush.msra.mxu0 0.0
      %757 = vmatpush.msra.mxu0 0.0
      %758 = vmatpush.msra.mxu0 0.0
      %759 = vmatpush.msra.mxu0 %v744
      %760 = vmatpush.msra.mxu0 %v743
      %761 = vmatpush.msra.mxu0 %v742
      %762 = vmatpush.msra.mxu0 %v741
      %763 = vmatmul.f32.gmra.mxu0 %v298
      %v764 = vpop.f32.mrf.mxu0
      %v765 = vadd.f32 0.0, %v764
      %766 = vmatmul.f32.gmra.mxu0 %v300
      %v767 = vpop.f32.mrf.mxu0
      %v768 = vadd.f32 0.0, %v767
      %769 = vmatmul.f32.gmra.mxu0 %v302
      %v770 = vpop.f32.mrf.mxu0
      %v771 = vadd.f32 0.0, %v770
      %772 = vmatmul.f32.gmra.mxu0 %v304
      %v773 = vpop.f32.mrf.mxu0
      %v774 = vadd.f32 0.0, %v773
      %775 = vmatmul.f32.gmra.mxu0 %v306
      %v776 = vpop.f32.mrf.mxu0
      %v777 = vadd.f32 0.0, %v776
      %778 = vmatmul.f32.gmra.mxu0 %v308
      %v779 = vpop.f32.mrf.mxu0
      %v780 = vadd.f32 0.0, %v779
      %781 = vmatmul.f32.gmra.mxu0 %v569
      %v782 = vpop.f32.mrf.mxu0
      %v783 = vadd.f32 0.0, %v782
      %784 = vmatmul.f32.gmra.mxu0 %v745
      %v785 = vpop.f32.mrf.mxu0
      %v786 = vadd.f32 0.0, %v785
      %787 = vdwg.mxu0
      %v788 = vadd.f32 %v728, %v765
      %v789 = vadd.f32 %v729, %v768
      %v790 = vadd.f32 %v730, %v771
      %v791 = vadd.f32 %v731, %v774
      %v792 = vadd.f32 %v732, %v777
      %v793 = vadd.f32 %v733, %v780
      %v794 = vadd.f32 %v734, %v783
      %v795 = vadd.f32 %v735, %v786
      %v796 = vrot.slane %v241, 2
      %v797 = vrot.slane %v242, 2
      %v798 = vsel %vm408, %v796, %v797
      %s799 = scalar_lea.vmem %s1, 256
      %v800 = vld [vmem:[%s799] sm:$0xff]
      %v801 = vld [vmem:[%s799 + $0x8] sm:$0xff]
      %v802 = vld [vmem:[%s799 + $0x10] sm:$0xff]
      %v803 = vld [vmem:[%s799 + $0x18] sm:$0xff]
      %v804 = vsel %vm293, %v798, 0
      %806 = vmatpush.msra.mxu0 0.0
      %807 = vmatpush.msra.mxu0 0.0
      %808 = vmatpush.msra.mxu0 0.0
      %809 = vmatpush.msra.mxu0 0.0
      %810 = vmatpush.msra.mxu0 0.0
      %811 = vmatpush.msra.mxu0 0.0
      %812 = vmatpush.msra.mxu0 0.0
      %813 = vmatpush.msra.mxu0 0.0
      %814 = vmatpush.msra.mxu0 0.0
      %815 = vmatpush.msra.mxu0 0.0
      %816 = vmatpush.msra.mxu0 0.0
      %817 = vmatpush.msra.mxu0 0.0
      %818 = vmatpush.msra.mxu0 %v803
      %819 = vmatpush.msra.mxu0 %v802
      %820 = vmatpush.msra.mxu0 %v801
      %821 = vmatpush.msra.mxu0 %v800
      %822 = vmatmul.f32.gmra.mxu0 %v442
      %v823 = vpop.f32.mrf.mxu0
      %v824 = vadd.f32 0.0, %v823
      %825 = vmatmul.f32.gmra.mxu0 %v444
      %v826 = vpop.f32.mrf.mxu0
      %v827 = vadd.f32 0.0, %v826
      %828 = vmatmul.f32.gmra.mxu0 %v446
      %v829 = vpop.f32.mrf.mxu0
      %v830 = vadd.f32 0.0, %v829
      %831 = vmatmul.f32.gmra.mxu0 %v448
      %v832 = vpop.f32.mrf.mxu0
      %v833 = vadd.f32 0.0, %v832
      %834 = vmatmul.f32.gmra.mxu0 %v450
      %v835 = vpop.f32.mrf.mxu0
      %v836 = vadd.f32 0.0, %v835
      %837 = vmatmul.f32.gmra.mxu0 %v452
      %v838 = vpop.f32.mrf.mxu0
      %v839 = vadd.f32 0.0, %v838
      %840 = vmatmul.f32.gmra.mxu0 %v628
      %v841 = vpop.f32.mrf.mxu0
      %v842 = vadd.f32 0.0, %v841
      %843 = vmatmul.f32.gmra.mxu0 %v804
      %v844 = vpop.f32.mrf.mxu0
      %v845 = vadd.f32 0.0, %v844
      %846 = vdwg.mxu0
      %v847 = vadd.f32 %v788, %v824
      %v848 = vadd.f32 %v789, %v827
      %v849 = vadd.f32 %v790, %v830
      %v850 = vadd.f32 %v791, %v833
      %v851 = vadd.f32 %v792, %v836
      %v852 = vadd.f32 %v793, %v839
      %v853 = vadd.f32 %v794, %v842
      %v854 = vadd.f32 %v795, %v845
      %855 = vst.msk [vmem:[%s212] sm:$0xff] %vm293, %v847
      %856 = vst.msk [vmem:[%s212 + $0x8] sm:$0xff] %vm293, %v848
      %857 = vst.msk [vmem:[%s212 + $0x10] sm:$0xff] %vm293, %v849
      %858 = vst.msk [vmem:[%s212 + $0x18] sm:$0xff] %vm293, %v850
      %859 = vst.msk [vmem:[%s212 + $0x20] sm:$0xff] %vm293, %v851
      %860 = vst.msk [vmem:[%s212 + $0x28] sm:$0xff] %vm293, %v852
      %861 = vst.msk [vmem:[%s212 + $0x30] sm:$0xff] %vm293, %v853
      %862 = vst.msk [vmem:[%s212 + $0x38] sm:$0xff] %vm293, %v854
      %871 = vrot.lane.b32.xlu0 %v847, 96
      %v872 = vpop.permute.xlu0 %871
      %873 = vrot.lane.b32.xlu0 %v848, 96
      %v874 = vpop.permute.xlu0 %873
      %875 = vrot.lane.b32.xlu0 %v849, 96
      %v876 = vpop.permute.xlu0 %875
      %877 = vrot.lane.b32.xlu0 %v850, 96
      %v878 = vpop.permute.xlu0 %877
      %879 = vrot.lane.b32.xlu0 %v851, 96
      %v880 = vpop.permute.xlu0 %879
      %881 = vrot.lane.b32.xlu0 %v852, 96
      %v882 = vpop.permute.xlu0 %881
      %883 = vrot.lane.b32.xlu0 %v853, 96
      %v884 = vpop.permute.xlu0 %883
      %885 = vrot.lane.b32.xlu0 %v854, 96
      %v886 = vpop.permute.xlu0 %885
      %895 = vst.msk [vmem:[%s217] sm:$0xff] %vm293, %v872
      %896 = vst.msk [vmem:[%s217 + $0x8] sm:$0xff] %vm293, %v874
      %897 = vst.msk [vmem:[%s217 + $0x10] sm:$0xff] %vm293, %v876
      %898 = vst.msk [vmem:[%s217 + $0x18] sm:$0xff] %vm293, %v878
      %899 = vst.msk [vmem:[%s217 + $0x20] sm:$0xff] %vm293, %v880
      %900 = vst.msk [vmem:[%s217 + $0x28] sm:$0xff] %vm293, %v882
      %901 = vst.msk [vmem:[%s217 + $0x30] sm:$0xff] %vm293, %v884
      %902 = vst.msk [vmem:[%s217 + $0x38] sm:$0xff] %vm293, %v886
      %903 = vrot.lane.b32.xlu0 %v847, 64
      %v904 = vpop.permute.xlu0 %903
      %905 = vrot.lane.b32.xlu0 %v848, 64
      %v906 = vpop.permute.xlu0 %905
      %907 = vrot.lane.b32.xlu0 %v849, 64
      %v908 = vpop.permute.xlu0 %907
      %909 = vrot.lane.b32.xlu0 %v850, 64
      %v910 = vpop.permute.xlu0 %909
      %911 = vrot.lane.b32.xlu0 %v851, 64
      %v912 = vpop.permute.xlu0 %911
      %913 = vrot.lane.b32.xlu0 %v852, 64
      %v914 = vpop.permute.xlu0 %913
      %915 = vrot.lane.b32.xlu0 %v853, 64
      %v916 = vpop.permute.xlu0 %915
      %917 = vrot.lane.b32.xlu0 %v854, 64
      %v918 = vpop.permute.xlu0 %917
      %927 = vst.msk [vmem:[%s222] sm:$0xff] %vm293, %v904
      %928 = vst.msk [vmem:[%s222 + $0x8] sm:$0xff] %vm293, %v906
      %929 = vst.msk [vmem:[%s222 + $0x10] sm:$0xff] %vm293, %v908
      %930 = vst.msk [vmem:[%s222 + $0x18] sm:$0xff] %vm293, %v910
      %931 = vst.msk [vmem:[%s222 + $0x20] sm:$0xff] %vm293, %v912
      %932 = vst.msk [vmem:[%s222 + $0x28] sm:$0xff] %vm293, %v914
      %933 = vst.msk [vmem:[%s222 + $0x30] sm:$0xff] %vm293, %v916
      %934 = vst.msk [vmem:[%s222 + $0x38] sm:$0xff] %vm293, %v918
      %p935 = scmp.lt.s32.totalorder %s16, 1
      %s936 = scalar_select %p935, %s16, 1
      %s937 = smul.addr %s936, 8
      %s938 = smul.addr %s937, 8
      %s939 = scalar_lea.vmem %s2, %s938
      %p940 = scmp.lt.s32.totalorder %s16, 1
      %s941 = scalar_select %p940, %s16, 1
      %s942 = smul.addr %s941, 8
      %s943 = smul.addr %s942, 8
      %s944 = scalar_lea.vmem %s3, %s943
      %p945 = scmp.lt.s32.totalorder %s16, 1
      %s946 = scalar_select %p945, %s16, 1
      %s947 = smul.addr %s946, 8
      %s948 = smul.addr %s947, 8
      %s949 = scalar_lea.vmem %s4, %s948
      // Predicated region
      $region29: #{tpu_custom_call.1} parent=27 // pred_check
        %p950 = pneg %p81
      $region30: #{tpu_custom_call.1} parent=27 // pred_check_branch
        %952 = sbr.rel (%p950) target = $region32
      $region31: #{tpu_custom_call.1} parent=27 // pred_region
        _
      $region32: #{tpu_custom_call.1} parent=27 // pred_fallthru
        _
      // Predicated region
      $region33: #{tpu_custom_call.1} parent=27 // pred_check
        %p953 = pneg %p107
      $region34: #{tpu_custom_call.1} parent=27 // pred_check_branch
        %955 = sbr.rel (%p953) target = $region36
      $region35: #{tpu_custom_call.1} parent=27 // pred_region
        _
      $region36: #{tpu_custom_call.1} parent=27 // pred_fallthru
        _
      // Predicated region
      $region37: #{tpu_custom_call.1} parent=27 // pred_check
        %p956 = pneg %p133
      $region38: #{tpu_custom_call.1} parent=27 // pred_check_branch
        %958 = sbr.rel (%p956) target = $region40
      $region39: #{tpu_custom_call.1} parent=27 // pred_region
        _
      $region40: #{tpu_custom_call.1} parent=27 // pred_fallthru
        _
    $region28: #{tpu_custom_call.1} parent=5 // pred_fallthru
      _
    %p959 = scmp.le.s32.totalorder 2, %s11
    // Predicated region
    $region41: #{tpu_custom_call.1} parent=5 // pred_check
      %p960 = pneg %p959
    $region42: #{tpu_custom_call.1} parent=5 // pred_check_branch
      %962 = sbr.rel (%p960) target = $region44
    $region43: #{tpu_custom_call.1} parent=5 // pred_region
      %s963 = ssub.s32 %s11, 2
      // Predicated region
      $region45: #{tpu_custom_call.1} parent=43 // pred_check
        %p964 = pneg %p87
      $region46: #{tpu_custom_call.1} parent=43 // pred_check_branch
        %966 = sbr.rel (%p964) target = $region48
      $region47: #{tpu_custom_call.1} parent=43 // pred_region
        %p967 = scmp.lt.s32.totalorder %s17, 1
        %s968 = scalar_select %p967, %s17, 1
        %s969 = smul.addr %s968, 8
        %s970 = smul.addr %s969, 8
        %s971 = scalar_lea.vmem %s2, %s970
      $region48: #{tpu_custom_call.1} parent=43 // pred_fallthru
        _
      // Predicated region
      $region49: #{tpu_custom_call.1} parent=43 // pred_check
        %p972 = pneg %p113
      $region50: #{tpu_custom_call.1} parent=43 // pred_check_branch
        %974 = sbr.rel (%p972) target = $region52
      $region51: #{tpu_custom_call.1} parent=43 // pred_region
        %p975 = scmp.lt.s32.totalorder %s17, 1
        %s976 = scalar_select %p975, %s17, 1
        %s977 = smul.addr %s976, 8
        %s978 = smul.addr %s977, 8
        %s979 = scalar_lea.vmem %s3, %s978
      $region52: #{tpu_custom_call.1} parent=43 // pred_fallthru
        _
      // Predicated region
      $region53: #{tpu_custom_call.1} parent=43 // pred_check
        %p980 = pneg %p139
      $region54: #{tpu_custom_call.1} parent=43 // pred_check_branch
        %982 = sbr.rel (%p980) target = $region56
      $region55: #{tpu_custom_call.1} parent=43 // pred_region
        %p983 = scmp.lt.s32.totalorder %s17, 1
        %s984 = scalar_select %p983, %s17, 1
        %s985 = smul.addr %s984, 8
        %s986 = smul.addr %s985, 8
        %s987 = scalar_lea.vmem %s4, %s986
      $region56: #{tpu_custom_call.1} parent=43 // pred_fallthru
        _
    $region44: #{tpu_custom_call.1} parent=5 // pred_fallthru
      _
  $region6: #{tpu_custom_call.1} parent=0 // loop_footer
    %s15 = sadd.s32 1, %s11
  $region7: #{tpu_custom_call.1} parent=0 // loop_footer_branch
    %10 = sbr.rel target = $region3
  $region8: #{tpu_custom_call.1} parent=0 // loop_exit
    _

</llo_original>
